<compile_context>
chip_gen: v7x
topology: tpu7x:2x2x1
jax: 0.10.0
libtpu: 0.0.40
codegen_flags: <defaults>
</compile_context>

<pallas_src>
import jax
import jax.numpy as jnp
from jax import lax
from jax.experimental import pallas as pl
from jax.experimental.pallas import tpu as pltpu

_LANES = 128
_SUBLANES = 8
_ROW_UNIT = _SUBLANES * _LANES          # 1024 rows: minimal (8,128)-aligned chunk
_EPS = 1e-30                            # keeps rsqrt finite on zero-padded rows


def _cdiv(a, b):
    return -(-a // b)


def s2s1_kernel(w_ref, b_ref, x_ref, o_ref):
    """w_ref: (5, D) SMEM, b_ref: (5,) SMEM, x_ref: (D, TB, 128) VMEM,
    o_ref: (9, TB, 128) VMEM.  Batch rows live in (sublane, lane)."""
    d_in, tile_b, _ = x_ref.shape

    # Hoist the 5 x (D+1) parameters into scalar values once per grid step.
    w = [[w_ref[j, d] for d in range(d_in)] for j in range(5)]
    b = [b_ref[j] for j in range(5)]

    # Strip-mine over sublane strips to bound vreg pressure.
    strip = 16 if tile_b % 16 == 0 else _SUBLANES
    n_strips = tile_b // strip

    @pl.loop(0, n_strips)
    def _(r):
        r0 = pl.multiple_of(r * strip, strip)
        rows = pl.ds(r0, strip)
        xs = [x_ref[d, rows] for d in range(d_in)]

        # Fused linear layers (rows 0..2: s2_map, rows 3..4: s1_map) as VPU
        # broadcast multiply-adds with scalar weights.
        def project(j):
            acc = xs[0] * w[j][0]
            for d in range(1, d_in):
                acc = acc + xs[d] * w[j][d]
            return acc + b[j]

        ax = project(0)   # un-normalized s2 components
        ay = project(1)
        az = project(2)
        s1a = project(3)  # un-normalized s1 components
        s1b = project(4)

        # Fold the s2 normalization into the Rodrigues coefficients:
        #   t = (1-c)/|s2|^2,  u = s/|s2|      (rsqrt -> EUP slot)
        xx = ax * ax
        yy = ay * ay
        zz = az * az
        inv2 = lax.rsqrt(xx + yy + zz + _EPS)          # 1/|s2|
        inv1 = lax.rsqrt(s1a * s1a + s1b * s1b + _EPS)  # 1/|s1|
        c = s1a * inv1
        s = s1b * inv1
        t = ((1.0 - c) * inv2) * inv2
        u = s * inv2

        xy = ax * ay
        xz = ax * az
        yz = ay * az
        txy = t * xy
        txz = t * xz
        tyz = t * yz
        ux = u * ax
        uy = u * ay
        uz = u * az

        # R = I + s*K + (1-c)*K@K, diagonals via the identity c + t*a_i^2.
        # Nine lane-dense plane stores (row-major r00..r22).
        o_ref[0, rows] = c + t * xx
        o_ref[1, rows] = txy - uz
        o_ref[2, rows] = txz + uy
        o_ref[3, rows] = txy + uz
        o_ref[4, rows] = c + t * yy
        o_ref[5, rows] = tyz - ux
        o_ref[6, rows] = txz - uy
        o_ref[7, rows] = tyz + ux
        o_ref[8, rows] = c + t * zz


def s2s1_mean(x, w_s2, b_s2, w_s1, b_s1, *, target_block_rows=65536,
              planar_output=False):
    """x: (N, D) f32; w_s2: (3, D); b_s2: (3,); w_s1: (2, D); b_s1: (2,).

    Returns (N, 3, 3) rotation matrices (matches the PyTorch module), or the
    kernel-native planar (9, N) layout (row-major r00..r22 per column) when
    planar_output=True so downstream consumers can skip a full HBM relayout."""
    N, D = x.shape
    x = jnp.asarray(x, jnp.float32)

    # Fuse the two linear layers: rows 0..2 -> s2_map, rows 3..4 -> s1_map.
    w_all = jnp.concatenate(
        [jnp.asarray(w_s2, jnp.float32), jnp.asarray(w_s1, jnp.float32)], axis=0
    )  # (5, D)
    b_all = jnp.concatenate(
        [jnp.asarray(b_s2, jnp.float32), jnp.asarray(b_s1, jnp.float32)], axis=0
    )  # (5,)

    # Grid derivation: pad only to 1024-row units, then split the units into
    # ~target_block_rows grid steps.  Waste stays below `grid` extra units.
    target = max(_ROW_UNIT, min(int(target_block_rows), 256 * _ROW_UNIT))
    target_units = target // _ROW_UNIT
    units = _cdiv(N, _ROW_UNIT)
    grid = _cdiv(units, target_units)
    if units >= 2:
        grid = max(grid, 2)            # keep both v7x TensorCores busy
    units_per_block = _cdiv(units, grid)
    block_rows = units_per_block * _ROW_UNIT
    n_pad = grid * block_rows
    tile_b = block_rows // _LANES      # sublane extent per grid step (mult of 8)
    nb = n_pad // _LANES

    if n_pad != N:
        x = jnp.pad(x, ((0, n_pad - N), (0, 0)))
    # (n_pad, D) -> (D, Nb, 128): batch in (sublane, lane).  One relayout pass
    # over the input; jit the caller so pad + transpose fuse into a single copy.
    # TODO(synk): accept feature-major (D, N) input directly to drop this pass.
    xt = x.T.reshape(D, nb, _LANES)

    # Double-buffered in+out tiles plus headroom; matters on v5e's 16 MiB
    # default scoped-VMEM limit when target_block_rows is raised.
    tile_bytes = (D + 9) * tile_b * _LANES * 4
    vmem_limit = max(16 << 20, min(48 << 20, 3 * tile_bytes + (2 << 20)))

    out = pl.pallas_call(
        s2s1_kernel,
        out_shape=jax.ShapeDtypeStruct((9, nb, _LANES), jnp.float32),
        grid_spec=pltpu.PrefetchScalarGridSpec(
            num_scalar_prefetch=0,
            grid=(grid,),
            in_specs=[
                pl.BlockSpec(memory_space=pltpu.MemorySpace.SMEM),  # fused W (5, D)
                pl.BlockSpec(memory_space=pltpu.MemorySpace.SMEM),  # fused b (5,)
                pl.BlockSpec((D, tile_b, _LANES), lambda i: (0, i, 0)),  # x slab
            ],
            out_specs=pl.BlockSpec((9, tile_b, _LANES), lambda i: (0, i, 0)),
        ),
        compiler_params=pltpu.CompilerParams(
            dimension_semantics=("parallel",),
            vmem_limit_bytes=vmem_limit,
        ),
    )(w_all, b_all, xt)

    planar = out.reshape(9, n_pad)[:, :N]          # (9, N) lane-dense layout
    if planar_output:
        return planar
    # (9, N) -> (N, 3, 3): one output relayout pass, required only by the
    # (N, 3, 3) interface of the original module.
    return planar.T.reshape(N, 3, 3)


def s2s1_mean_ref(x, w_s2, b_s2, w_s1, b_s1):
    """Pure-JAX reference mirroring the PyTorch module."""
    s2 = x @ w_s2.T + b_s2
    s2 = s2 / jnp.linalg.norm(s2, axis=-1, keepdims=True)
    s1 = x @ w_s1.T + b_s1
    s1 = s1 / jnp.linalg.norm(s1, axis=-1, keepdims=True)
    vx, vy, vz = s2[..., 0], s2[..., 1], s2[..., 2]
    zero = jnp.zeros_like(vx)
    K = jnp.stack(
        [
            jnp.stack([zero, -vz, vy], -1),
            jnp.stack([vz, zero, -vx], -1),
            jnp.stack([-vy, vx, zero], -1),
        ],
        -2,
    )
    c = s1[..., 0][..., None, None]
    s = s1[..., 1][..., None, None]
    eye = jnp.eye(3, dtype=x.dtype)
    return eye + s * K + (1.0 - c) * (K @ K)


if __name__ == "__main__":
    D = 5  # module maps R^5 -> SO(3)
    key = jax.random.PRNGKey(0)
    kx, k1, k2, k3, k4 = jax.random.split(key, 5)

    # Deterministic parameter init (nn.Linear-style uniform bounds).
    bound = 1.0 / (D ** 0.5)
    w_s2 = jax.random.uniform(k1, (3, D), jnp.float32, -bound, bound)
    b_s2 = jax.random.uniform(k2, (3,), jnp.float32, -bound, bound)
    w_s1 = jax.random.uniform(k3, (2, D), jnp.float32, -bound, bound)
    b_s1 = jax.random.uniform(k4, (2,), jnp.float32, -bound, bound)

    fn = jax.jit(s2s1_mean, static_argnames=("planar_output",))

    # N=300: single grid step, padding/slicing path, 8-row strips.
    # N=2600: >1 row-unit -> grid forced to 2 (v7x two-TC path), 16-row strips.
    for n in (300, 2600):
        x = jax.random.normal(jax.random.fold_in(kx, n), (n, D), dtype=jnp.float32)
        out = jax.block_until_ready(fn(x, w_s2, b_s2, w_s1, b_s1))
        ref = s2s1_mean_ref(x, w_s2, b_s2, w_s1, b_s1)
        assert out.shape == (n, 3, 3)
        err = float(jnp.max(jnp.abs(out - ref)))
        assert jnp.allclose(out, ref, atol=1e-5, rtol=1e-5), f"N={n} max err {err}"
        # sanity: rows should be proper rotation matrices (R R^T ~ I)
        rrT = jnp.einsum("nij,nkj->nik", out, out)
        assert jnp.allclose(rrT, jnp.eye(3)[None], atol=1e-4), f"N={n} not orthogonal"

    # Planar (9, N) output path for fusion-friendly consumers.
    xp = jax.random.normal(kx, (2600, D), dtype=jnp.float32)
    planar = jax.block_until_ready(
        fn(xp, w_s2, b_s2, w_s1, b_s1, planar_output=True))
    ref_p = s2s1_mean_ref(xp, w_s2, b_s2, w_s1, b_s1).reshape(2600, 9).T
    assert planar.shape == (9, 2600)
    assert jnp.allclose(planar, ref_p, atol=1e-5, rtol=1e-5)

    print("KERNEL_OK")
</pallas_src>

<mosaic_0001>
module attributes {stable_mosaic.version = 11 : i64} {
  func.func @s2s1_kernel(%arg0: i32, %arg1: memref<5x5xf32, #tpu.memory_space<smem>>, %arg2: memref<5xf32, #tpu.memory_space<smem>>, %arg3: memref<5x8x128xf32, #tpu.memory_space<vmem>>, %arg4: memref<9x8x128xf32, #tpu.memory_space<vmem>>) attributes {dimension_semantics = [#tpu.dimension_semantics<parallel>], iteration_bounds = array<i64: 1>, scalar_prefetch = 0 : i64, scratch_operands = 0 : i64, tpu.core_type = #tpu.core_type<tc>, window_params = [{transform_indices = @transform_0, window_bounds = array<i64: 5, 5>}, {transform_indices = @transform_1, window_bounds = array<i64: 5>}, {transform_indices = @transform_2, window_bounds = array<i64: 5, 8, 128>}, {transform_indices = @transform_3, window_bounds = array<i64: 9, 8, 128>}]} {
    %c0 = arith.constant 0 : index
    %c0_0 = arith.constant 0 : index
    %0 = memref.load %arg1[%c0, %c0_0] : memref<5x5xf32, #tpu.memory_space<smem>>
    %c0_1 = arith.constant 0 : index
    %c1 = arith.constant 1 : index
    %1 = memref.load %arg1[%c0_1, %c1] : memref<5x5xf32, #tpu.memory_space<smem>>
    %c0_2 = arith.constant 0 : index
    %c2 = arith.constant 2 : index
    %2 = memref.load %arg1[%c0_2, %c2] : memref<5x5xf32, #tpu.memory_space<smem>>
    %c0_3 = arith.constant 0 : index
    %c3 = arith.constant 3 : index
    %3 = memref.load %arg1[%c0_3, %c3] : memref<5x5xf32, #tpu.memory_space<smem>>
    %c0_4 = arith.constant 0 : index
    %c4 = arith.constant 4 : index
    %4 = memref.load %arg1[%c0_4, %c4] : memref<5x5xf32, #tpu.memory_space<smem>>
    %c1_5 = arith.constant 1 : index
    %c0_6 = arith.constant 0 : index
    %5 = memref.load %arg1[%c1_5, %c0_6] : memref<5x5xf32, #tpu.memory_space<smem>>
    %c1_7 = arith.constant 1 : index
    %c1_8 = arith.constant 1 : index
    %6 = memref.load %arg1[%c1_7, %c1_8] : memref<5x5xf32, #tpu.memory_space<smem>>
    %c1_9 = arith.constant 1 : index
    %c2_10 = arith.constant 2 : index
    %7 = memref.load %arg1[%c1_9, %c2_10] : memref<5x5xf32, #tpu.memory_space<smem>>
    %c1_11 = arith.constant 1 : index
    %c3_12 = arith.constant 3 : index
    %8 = memref.load %arg1[%c1_11, %c3_12] : memref<5x5xf32, #tpu.memory_space<smem>>
    %c1_13 = arith.constant 1 : index
    %c4_14 = arith.constant 4 : index
    %9 = memref.load %arg1[%c1_13, %c4_14] : memref<5x5xf32, #tpu.memory_space<smem>>
    %c2_15 = arith.constant 2 : index
    %c0_16 = arith.constant 0 : index
    %10 = memref.load %arg1[%c2_15, %c0_16] : memref<5x5xf32, #tpu.memory_space<smem>>
    %c2_17 = arith.constant 2 : index
    %c1_18 = arith.constant 1 : index
    %11 = memref.load %arg1[%c2_17, %c1_18] : memref<5x5xf32, #tpu.memory_space<smem>>
    %c2_19 = arith.constant 2 : index
    %c2_20 = arith.constant 2 : index
    %12 = memref.load %arg1[%c2_19, %c2_20] : memref<5x5xf32, #tpu.memory_space<smem>>
    %c2_21 = arith.constant 2 : index
    %c3_22 = arith.constant 3 : index
    %13 = memref.load %arg1[%c2_21, %c3_22] : memref<5x5xf32, #tpu.memory_space<smem>>
    %c2_23 = arith.constant 2 : index
    %c4_24 = arith.constant 4 : index
    %14 = memref.load %arg1[%c2_23, %c4_24] : memref<5x5xf32, #tpu.memory_space<smem>>
    %c3_25 = arith.constant 3 : index
    %c0_26 = arith.constant 0 : index
    %15 = memref.load %arg1[%c3_25, %c0_26] : memref<5x5xf32, #tpu.memory_space<smem>>
    %c3_27 = arith.constant 3 : index
    %c1_28 = arith.constant 1 : index
    %16 = memref.load %arg1[%c3_27, %c1_28] : memref<5x5xf32, #tpu.memory_space<smem>>
    %c3_29 = arith.constant 3 : index
    %c2_30 = arith.constant 2 : index
    %17 = memref.load %arg1[%c3_29, %c2_30] : memref<5x5xf32, #tpu.memory_space<smem>>
    %c3_31 = arith.constant 3 : index
    %c3_32 = arith.constant 3 : index
    %18 = memref.load %arg1[%c3_31, %c3_32] : memref<5x5xf32, #tpu.memory_space<smem>>
    %c3_33 = arith.constant 3 : index
    %c4_34 = arith.constant 4 : index
    %19 = memref.load %arg1[%c3_33, %c4_34] : memref<5x5xf32, #tpu.memory_space<smem>>
    %c4_35 = arith.constant 4 : index
    %c0_36 = arith.constant 0 : index
    %20 = memref.load %arg1[%c4_35, %c0_36] : memref<5x5xf32, #tpu.memory_space<smem>>
    %c4_37 = arith.constant 4 : index
    %c1_38 = arith.constant 1 : index
    %21 = memref.load %arg1[%c4_37, %c1_38] : memref<5x5xf32, #tpu.memory_space<smem>>
    %c4_39 = arith.constant 4 : index
    %c2_40 = arith.constant 2 : index
    %22 = memref.load %arg1[%c4_39, %c2_40] : memref<5x5xf32, #tpu.memory_space<smem>>
    %c4_41 = arith.constant 4 : index
    %c3_42 = arith.constant 3 : index
    %23 = memref.load %arg1[%c4_41, %c3_42] : memref<5x5xf32, #tpu.memory_space<smem>>
    %c4_43 = arith.constant 4 : index
    %c4_44 = arith.constant 4 : index
    %24 = memref.load %arg1[%c4_43, %c4_44] : memref<5x5xf32, #tpu.memory_space<smem>>
    %c0_45 = arith.constant 0 : index
    %25 = memref.load %arg2[%c0_45] : memref<5xf32, #tpu.memory_space<smem>>
    %c1_46 = arith.constant 1 : index
    %26 = memref.load %arg2[%c1_46] : memref<5xf32, #tpu.memory_space<smem>>
    %c2_47 = arith.constant 2 : index
    %27 = memref.load %arg2[%c2_47] : memref<5xf32, #tpu.memory_space<smem>>
    %c3_48 = arith.constant 3 : index
    %28 = memref.load %arg2[%c3_48] : memref<5xf32, #tpu.memory_space<smem>>
    %c4_49 = arith.constant 4 : index
    %29 = memref.load %arg2[%c4_49] : memref<5xf32, #tpu.memory_space<smem>>
    %c0_i32 = arith.constant 0 : i32
    %c1_i32 = arith.constant 1 : i32
    %30 = arith.muli %c0_i32, %c1_i32 : i32
    %c0_i32_50 = arith.constant 0 : i32
    %31 = arith.addi %c0_i32_50, %30 : i32
    %c8_i32 = arith.constant 8 : i32
    %32 = arith.muli %31, %c8_i32 : i32
    %33 = tpu.assume_multiple %32, 8 : i32
    %c0_51 = arith.constant 0 : index
    %34 = arith.index_cast %33 : i32 to index
    %c0_52 = arith.constant 0 : index
    %35 = vector.load %arg3[%c0_51, %34, %c0_52] : memref<5x8x128xf32, #tpu.memory_space<vmem>>, vector<1x8x128xf32>
    %36 = vector.shape_cast %35 : vector<1x8x128xf32> to vector<8x128xf32>
    %c1_53 = arith.constant 1 : index
    %37 = arith.index_cast %33 : i32 to index
    %c0_54 = arith.constant 0 : index
    %38 = vector.load %arg3[%c1_53, %37, %c0_54] : memref<5x8x128xf32, #tpu.memory_space<vmem>>, vector<1x8x128xf32>
    %39 = vector.shape_cast %38 : vector<1x8x128xf32> to vector<8x128xf32>
    %c2_55 = arith.constant 2 : index
    %40 = arith.index_cast %33 : i32 to index
    %c0_56 = arith.constant 0 : index
    %41 = vector.load %arg3[%c2_55, %40, %c0_56] : memref<5x8x128xf32, #tpu.memory_space<vmem>>, vector<1x8x128xf32>
    %42 = vector.shape_cast %41 : vector<1x8x128xf32> to vector<8x128xf32>
    %c3_57 = arith.constant 3 : index
    %43 = arith.index_cast %33 : i32 to index
    %c0_58 = arith.constant 0 : index
    %44 = vector.load %arg3[%c3_57, %43, %c0_58] : memref<5x8x128xf32, #tpu.memory_space<vmem>>, vector<1x8x128xf32>
    %45 = vector.shape_cast %44 : vector<1x8x128xf32> to vector<8x128xf32>
    %c4_59 = arith.constant 4 : index
    %46 = arith.index_cast %33 : i32 to index
    %c0_60 = arith.constant 0 : index
    %47 = vector.load %arg3[%c4_59, %46, %c0_60] : memref<5x8x128xf32, #tpu.memory_space<vmem>>, vector<1x8x128xf32>
    %48 = vector.shape_cast %47 : vector<1x8x128xf32> to vector<8x128xf32>
    %49 = vector.broadcast %0 : f32 to vector<8x128xf32>
    %50 = arith.mulf %36, %49 : vector<8x128xf32>
    %51 = vector.broadcast %1 : f32 to vector<8x128xf32>
    %52 = arith.mulf %39, %51 : vector<8x128xf32>
    %53 = arith.addf %50, %52 : vector<8x128xf32>
    %54 = vector.broadcast %2 : f32 to vector<8x128xf32>
    %55 = arith.mulf %42, %54 : vector<8x128xf32>
    %56 = arith.addf %53, %55 : vector<8x128xf32>
    %57 = vector.broadcast %3 : f32 to vector<8x128xf32>
    %58 = arith.mulf %45, %57 : vector<8x128xf32>
    %59 = arith.addf %56, %58 : vector<8x128xf32>
    %60 = vector.broadcast %4 : f32 to vector<8x128xf32>
    %61 = arith.mulf %48, %60 : vector<8x128xf32>
    %62 = arith.addf %59, %61 : vector<8x128xf32>
    %63 = vector.broadcast %25 : f32 to vector<8x128xf32>
    %64 = arith.addf %62, %63 : vector<8x128xf32>
    %65 = vector.broadcast %5 : f32 to vector<8x128xf32>
    %66 = arith.mulf %36, %65 : vector<8x128xf32>
    %67 = vector.broadcast %6 : f32 to vector<8x128xf32>
    %68 = arith.mulf %39, %67 : vector<8x128xf32>
    %69 = arith.addf %66, %68 : vector<8x128xf32>
    %70 = vector.broadcast %7 : f32 to vector<8x128xf32>
    %71 = arith.mulf %42, %70 : vector<8x128xf32>
    %72 = arith.addf %69, %71 : vector<8x128xf32>
    %73 = vector.broadcast %8 : f32 to vector<8x128xf32>
    %74 = arith.mulf %45, %73 : vector<8x128xf32>
    %75 = arith.addf %72, %74 : vector<8x128xf32>
    %76 = vector.broadcast %9 : f32 to vector<8x128xf32>
    %77 = arith.mulf %48, %76 : vector<8x128xf32>
    %78 = arith.addf %75, %77 : vector<8x128xf32>
    %79 = vector.broadcast %26 : f32 to vector<8x128xf32>
    %80 = arith.addf %78, %79 : vector<8x128xf32>
    %81 = vector.broadcast %10 : f32 to vector<8x128xf32>
    %82 = arith.mulf %36, %81 : vector<8x128xf32>
    %83 = vector.broadcast %11 : f32 to vector<8x128xf32>
    %84 = arith.mulf %39, %83 : vector<8x128xf32>
    %85 = arith.addf %82, %84 : vector<8x128xf32>
    %86 = vector.broadcast %12 : f32 to vector<8x128xf32>
    %87 = arith.mulf %42, %86 : vector<8x128xf32>
    %88 = arith.addf %85, %87 : vector<8x128xf32>
    %89 = vector.broadcast %13 : f32 to vector<8x128xf32>
    %90 = arith.mulf %45, %89 : vector<8x128xf32>
    %91 = arith.addf %88, %90 : vector<8x128xf32>
    %92 = vector.broadcast %14 : f32 to vector<8x128xf32>
    %93 = arith.mulf %48, %92 : vector<8x128xf32>
    %94 = arith.addf %91, %93 : vector<8x128xf32>
    %95 = vector.broadcast %27 : f32 to vector<8x128xf32>
    %96 = arith.addf %94, %95 : vector<8x128xf32>
    %97 = vector.broadcast %15 : f32 to vector<8x128xf32>
    %98 = arith.mulf %36, %97 : vector<8x128xf32>
    %99 = vector.broadcast %16 : f32 to vector<8x128xf32>
    %100 = arith.mulf %39, %99 : vector<8x128xf32>
    %101 = arith.addf %98, %100 : vector<8x128xf32>
    %102 = vector.broadcast %17 : f32 to vector<8x128xf32>
    %103 = arith.mulf %42, %102 : vector<8x128xf32>
    %104 = arith.addf %101, %103 : vector<8x128xf32>
    %105 = vector.broadcast %18 : f32 to vector<8x128xf32>
    %106 = arith.mulf %45, %105 : vector<8x128xf32>
    %107 = arith.addf %104, %106 : vector<8x128xf32>
    %108 = vector.broadcast %19 : f32 to vector<8x128xf32>
    %109 = arith.mulf %48, %108 : vector<8x128xf32>
    %110 = arith.addf %107, %109 : vector<8x128xf32>
    %111 = vector.broadcast %28 : f32 to vector<8x128xf32>
    %112 = arith.addf %110, %111 : vector<8x128xf32>
    %113 = vector.broadcast %20 : f32 to vector<8x128xf32>
    %114 = arith.mulf %36, %113 : vector<8x128xf32>
    %115 = vector.broadcast %21 : f32 to vector<8x128xf32>
    %116 = arith.mulf %39, %115 : vector<8x128xf32>
    %117 = arith.addf %114, %116 : vector<8x128xf32>
    %118 = vector.broadcast %22 : f32 to vector<8x128xf32>
    %119 = arith.mulf %42, %118 : vector<8x128xf32>
    %120 = arith.addf %117, %119 : vector<8x128xf32>
    %121 = vector.broadcast %23 : f32 to vector<8x128xf32>
    %122 = arith.mulf %45, %121 : vector<8x128xf32>
    %123 = arith.addf %120, %122 : vector<8x128xf32>
    %124 = vector.broadcast %24 : f32 to vector<8x128xf32>
    %125 = arith.mulf %48, %124 : vector<8x128xf32>
    %126 = arith.addf %123, %125 : vector<8x128xf32>
    %127 = vector.broadcast %29 : f32 to vector<8x128xf32>
    %128 = arith.addf %126, %127 : vector<8x128xf32>
    %129 = arith.mulf %64, %64 : vector<8x128xf32>
    %130 = arith.mulf %80, %80 : vector<8x128xf32>
    %131 = arith.mulf %96, %96 : vector<8x128xf32>
    %132 = arith.addf %129, %130 : vector<8x128xf32>
    %133 = arith.addf %132, %131 : vector<8x128xf32>
    %cst = arith.constant 1.000000e-30 : f32
    %134 = vector.broadcast %cst : f32 to vector<8x128xf32>
    %135 = arith.addf %133, %134 : vector<8x128xf32>
    %136 = math.rsqrt %135 : vector<8x128xf32>
    %137 = arith.mulf %112, %112 : vector<8x128xf32>
    %138 = arith.mulf %128, %128 : vector<8x128xf32>
    %139 = arith.addf %137, %138 : vector<8x128xf32>
    %cst_61 = arith.constant 1.000000e-30 : f32
    %140 = vector.broadcast %cst_61 : f32 to vector<8x128xf32>
    %141 = arith.addf %139, %140 : vector<8x128xf32>
    %142 = math.rsqrt %141 : vector<8x128xf32>
    %143 = arith.mulf %112, %142 : vector<8x128xf32>
    %144 = arith.mulf %128, %142 : vector<8x128xf32>
    %cst_62 = arith.constant 1.000000e+00 : f32
    %145 = vector.broadcast %cst_62 : f32 to vector<8x128xf32>
    %146 = arith.subf %145, %143 : vector<8x128xf32>
    %147 = arith.mulf %146, %136 : vector<8x128xf32>
    %148 = arith.mulf %147, %136 : vector<8x128xf32>
    %149 = arith.mulf %144, %136 : vector<8x128xf32>
    %150 = arith.mulf %64, %80 : vector<8x128xf32>
    %151 = arith.mulf %64, %96 : vector<8x128xf32>
    %152 = arith.mulf %80, %96 : vector<8x128xf32>
    %153 = arith.mulf %148, %150 : vector<8x128xf32>
    %154 = arith.mulf %148, %151 : vector<8x128xf32>
    %155 = arith.mulf %148, %152 : vector<8x128xf32>
    %156 = arith.mulf %149, %64 : vector<8x128xf32>
    %157 = arith.mulf %149, %80 : vector<8x128xf32>
    %158 = arith.mulf %149, %96 : vector<8x128xf32>
    %159 = arith.mulf %148, %129 : vector<8x128xf32>
    %160 = arith.addf %143, %159 : vector<8x128xf32>
    %c0_63 = arith.constant 0 : index
    %161 = arith.index_cast %33 : i32 to index
    %c0_64 = arith.constant 0 : index
    %162 = vector.load %arg4[%c0_63, %161, %c0_64] : memref<9x8x128xf32, #tpu.memory_space<vmem>>, vector<1x8x128xf32>
    %163 = vector.shape_cast %162 : vector<1x8x128xf32> to vector<8x128xf32>
    %164 = vector.shape_cast %160 : vector<8x128xf32> to vector<1x8x128xf32>
    tpu.vector_store %arg4[%c0_63, %161, %c0_64], %164 {strides = array<i32>} : memref<9x8x128xf32, #tpu.memory_space<vmem>>, vector<1x8x128xf32>,
    %165 = arith.subf %153, %158 : vector<8x128xf32>
    %c1_65 = arith.constant 1 : index
    %166 = arith.index_cast %33 : i32 to index
    %c0_66 = arith.constant 0 : index
    %167 = vector.load %arg4[%c1_65, %166, %c0_66] : memref<9x8x128xf32, #tpu.memory_space<vmem>>, vector<1x8x128xf32>
    %168 = vector.shape_cast %167 : vector<1x8x128xf32> to vector<8x128xf32>
    %169 = vector.shape_cast %165 : vector<8x128xf32> to vector<1x8x128xf32>
    tpu.vector_store %arg4[%c1_65, %166, %c0_66], %169 {strides = array<i32>} : memref<9x8x128xf32, #tpu.memory_space<vmem>>, vector<1x8x128xf32>,
    %170 = arith.addf %154, %157 : vector<8x128xf32>
    %c2_67 = arith.constant 2 : index
    %171 = arith.index_cast %33 : i32 to index
    %c0_68 = arith.constant 0 : index
    %172 = vector.load %arg4[%c2_67, %171, %c0_68] : memref<9x8x128xf32, #tpu.memory_space<vmem>>, vector<1x8x128xf32>
    %173 = vector.shape_cast %172 : vector<1x8x128xf32> to vector<8x128xf32>
    %174 = vector.shape_cast %170 : vector<8x128xf32> to vector<1x8x128xf32>
    tpu.vector_store %arg4[%c2_67, %171, %c0_68], %174 {strides = array<i32>} : memref<9x8x128xf32, #tpu.memory_space<vmem>>, vector<1x8x128xf32>,
    %175 = arith.addf %153, %158 : vector<8x128xf32>
    %c3_69 = arith.constant 3 : index
    %176 = arith.index_cast %33 : i32 to index
    %c0_70 = arith.constant 0 : index
    %177 = vector.load %arg4[%c3_69, %176, %c0_70] : memref<9x8x128xf32, #tpu.memory_space<vmem>>, vector<1x8x128xf32>
    %178 = vector.shape_cast %177 : vector<1x8x128xf32> to vector<8x128xf32>
    %179 = vector.shape_cast %175 : vector<8x128xf32> to vector<1x8x128xf32>
    tpu.vector_store %arg4[%c3_69, %176, %c0_70], %179 {strides = array<i32>} : memref<9x8x128xf32, #tpu.memory_space<vmem>>, vector<1x8x128xf32>,
    %180 = arith.mulf %148, %130 : vector<8x128xf32>
    %181 = arith.addf %143, %180 : vector<8x128xf32>
    %c4_71 = arith.constant 4 : index
    %182 = arith.index_cast %33 : i32 to index
    %c0_72 = arith.constant 0 : index
    %183 = vector.load %arg4[%c4_71, %182, %c0_72] : memref<9x8x128xf32, #tpu.memory_space<vmem>>, vector<1x8x128xf32>
    %184 = vector.shape_cast %183 : vector<1x8x128xf32> to vector<8x128xf32>
    %185 = vector.shape_cast %181 : vector<8x128xf32> to vector<1x8x128xf32>
    tpu.vector_store %arg4[%c4_71, %182, %c0_72], %185 {strides = array<i32>} : memref<9x8x128xf32, #tpu.memory_space<vmem>>, vector<1x8x128xf32>,
    %186 = arith.subf %155, %156 : vector<8x128xf32>
    %c5 = arith.constant 5 : index
    %187 = arith.index_cast %33 : i32 to index
    %c0_73 = arith.constant 0 : index
    %188 = vector.load %arg4[%c5, %187, %c0_73] : memref<9x8x128xf32, #tpu.memory_space<vmem>>, vector<1x8x128xf32>
    %189 = vector.shape_cast %188 : vector<1x8x128xf32> to vector<8x128xf32>
    %190 = vector.shape_cast %186 : vector<8x128xf32> to vector<1x8x128xf32>
    tpu.vector_store %arg4[%c5, %187, %c0_73], %190 {strides = array<i32>} : memref<9x8x128xf32, #tpu.memory_space<vmem>>, vector<1x8x128xf32>,
    %191 = arith.subf %154, %157 : vector<8x128xf32>
    %c6 = arith.constant 6 : index
    %192 = arith.index_cast %33 : i32 to index
    %c0_74 = arith.constant 0 : index
    %193 = vector.load %arg4[%c6, %192, %c0_74] : memref<9x8x128xf32, #tpu.memory_space<vmem>>, vector<1x8x128xf32>
    %194 = vector.shape_cast %193 : vector<1x8x128xf32> to vector<8x128xf32>
    %195 = vector.shape_cast %191 : vector<8x128xf32> to vector<1x8x128xf32>
    tpu.vector_store %arg4[%c6, %192, %c0_74], %195 {strides = array<i32>} : memref<9x8x128xf32, #tpu.memory_space<vmem>>, vector<1x8x128xf32>,
    %196 = arith.addf %155, %156 : vector<8x128xf32>
    %c7 = arith.constant 7 : index
    %197 = arith.index_cast %33 : i32 to index
    %c0_75 = arith.constant 0 : index
    %198 = vector.load %arg4[%c7, %197, %c0_75] : memref<9x8x128xf32, #tpu.memory_space<vmem>>, vector<1x8x128xf32>
    %199 = vector.shape_cast %198 : vector<1x8x128xf32> to vector<8x128xf32>
    %200 = vector.shape_cast %196 : vector<8x128xf32> to vector<1x8x128xf32>
    tpu.vector_store %arg4[%c7, %197, %c0_75], %200 {strides = array<i32>} : memref<9x8x128xf32, #tpu.memory_space<vmem>>, vector<1x8x128xf32>,
    %201 = arith.mulf %148, %131 : vector<8x128xf32>
    %202 = arith.addf %143, %201 : vector<8x128xf32>
    %c8 = arith.constant 8 : index
    %203 = arith.index_cast %33 : i32 to index
    %c0_76 = arith.constant 0 : index
    %204 = vector.load %arg4[%c8, %203, %c0_76] : memref<9x8x128xf32, #tpu.memory_space<vmem>>, vector<1x8x128xf32>
    %205 = vector.shape_cast %204 : vector<1x8x128xf32> to vector<8x128xf32>
    %206 = vector.shape_cast %202 : vector<8x128xf32> to vector<1x8x128xf32>
    tpu.vector_store %arg4[%c8, %203, %c0_76], %206 {strides = array<i32>} : memref<9x8x128xf32, #tpu.memory_space<vmem>>, vector<1x8x128xf32>,
    %c1_i32_77 = arith.constant 1 : i32
    return
  }
  func.func @transform_0(%arg0: i32) -> (i32, i32) {
    %c0_i32 = arith.constant 0 : i32
    %c0_i32_0 = arith.constant 0 : i32
    %c0_i32_1 = arith.constant 0 : i32
    return %c0_i32, %c0_i32_0 : i32, i32
  }
  func.func @transform_1(%arg0: i32) -> i32 {
    %c0_i32 = arith.constant 0 : i32
    %c0_i32_0 = arith.constant 0 : i32
    return %c0_i32 : i32
  }
  func.func @transform_2(%arg0: i32) -> (i32, i32, i32) {
    %c0_i32 = arith.constant 0 : i32
    %c0_i32_0 = arith.constant 0 : i32
    %c0_i32_1 = arith.constant 0 : i32
    return %c0_i32, %arg0, %c0_i32_0 : i32, i32, i32
  }
  func.func @transform_3(%arg0: i32) -> (i32, i32, i32) {
    %c0_i32 = arith.constant 0 : i32
    %c0_i32_0 = arith.constant 0 : i32
    %c0_i32_1 = arith.constant 0 : i32
    return %c0_i32, %arg0, %c0_i32_0 : i32, i32, i32
  }
}

</mosaic_0001>

<llo_original>
// kernel: s2s1_mean.1
$region0: #{s2s1_mean.1}
  #allocation0 [shape = 'u32[]', space=smem, size = 0x4, offset = 0x4, fixed_abs, tag = 'smem constant byte address 0x4 - core index']
  #allocation1 [shape = 'u32[144,128]{1,0:T(1,128)}', space=vmem, size = 0x12000, scoped, tag = 'internal scratch']
  %s0 = inlined_call_operand.vmem [shape: f32[5,5], index: 0, kind: input, shape index: {}]
  %s1 = inlined_call_operand.vmem [shape: f32[5], index: 1, kind: input, shape index: {}]
  %s2 = inlined_call_operand.vmem [shape: f32[5,8,128], index: 2, kind: input, shape index: {}]
  %s3 = inlined_call_operand.vmem [shape: f32[9,8,128], index: 3, kind: output, shape index: {}]
  %s4 = sld [smem:[#allocation0]]
  $region30: #{s2s1_mean.1} parent=0
    _
  %s6 = ssub.s32 1, %s4
  %s7 = scalar_select 0, %s6, %s4
  $region1: #{s2s1_mean.1} parent=0
    #allocation2 [shape = 'u8[4096]{0}', space=smem, size = 0x1000, scoped, tag = 'input window, operand 0, single buffered']
    #allocation3 [shape = 's32[1]{0}', space=sflag, size = 0x4, scoped, tag = 'scoped memory for s2s1_mean.1']
    #allocation4 [shape = 'u8[512]{0}', space=smem, size = 0x200, scoped, tag = 'input window, operand 1, single buffered']
    #allocation5 [shape = 's32[1]{0}', space=sflag, size = 0x4, scoped, tag = 'scoped memory for s2s1_mean.1']
    %8 = vsyncpa [#allocation3], 0
    %9 = vsyncpa [#allocation5], 0
    // Predicated region
    $region2: #{s2s1_mean.1} parent=1 // pred_check
      _
    $region3: #{s2s1_mean.1} parent=1 // pred_check_branch
      %11 = sbr.rel (0) target = $region5
    $region4: #{s2s1_mean.1} parent=1 // pred_region
      %s13 = ssub.s32 128, 128
      %14 = vsyncadd [#allocation3], %s13
      %s16 = sshll.u32 %s0, 4
      %s17 = int_to_ptr.vmem [resolvable:$true] %s16
      %19 = dma.vmem_to_smem %s17, 128, [#allocation2], [#allocation3]
    $region5: #{s2s1_mean.1} parent=1 // pred_fallthru
      _
    // Predicated region
    $region6: #{s2s1_mean.1} parent=1 // pred_check
      _
    $region7: #{s2s1_mean.1} parent=1 // pred_check_branch
      %21 = sbr.rel (0) target = $region9
    $region8: #{s2s1_mean.1} parent=1 // pred_region
      %s23 = ssub.s32 16, 16
      %24 = vsyncadd [#allocation5], %s23
      %s26 = sshll.u32 %s1, 4
      %s27 = int_to_ptr.vmem [resolvable:$true] %s26
      %29 = dma.vmem_to_smem %s27, 16, [#allocation4], [#allocation5]
    $region9: #{s2s1_mean.1} parent=1 // pred_fallthru
      _
    // Predicated region
    $region10: #{s2s1_mean.1} parent=1 // pred_check
      _
    $region11: #{s2s1_mean.1} parent=1 // pred_check_branch
      %31 = sbr.rel (0) target = $region13
    $region12: #{s2s1_mean.1} parent=1 // pred_region
      _
    $region13: #{s2s1_mean.1} parent=1 // pred_fallthru
      _
    // Predicated region
    $region14: #{s2s1_mean.1} parent=1 // pred_check
      _
    $region15: #{s2s1_mean.1} parent=1 // pred_check_branch
      %33 = sbr.rel (0) target = $region17
    $region16: #{s2s1_mean.1} parent=1 // pred_region
      %34 = dma.done [#allocation3], 128
    $region17: #{s2s1_mean.1} parent=1 // pred_fallthru
      _
    // Predicated region
    $region18: #{s2s1_mean.1} parent=1 // pred_check
      _
    $region19: #{s2s1_mean.1} parent=1 // pred_check_branch
      %36 = sbr.rel (0) target = $region21
    $region20: #{s2s1_mean.1} parent=1 // pred_region
      %37 = dma.done [#allocation5], 16
    $region21: #{s2s1_mean.1} parent=1 // pred_fallthru
      _
    %38 = sfence
    %s39 = sld [smem:[#allocation2]]
    %s40 = sld [smem:[#allocation2 + $0x1]]
    %s41 = sld [smem:[#allocation2 + $0x2]]
    %s42 = sld [smem:[#allocation2 + $0x3]]
    %s43 = sld [smem:[#allocation2 + $0x4]]
    %s44 = sld [smem:[#allocation2 + $0x80]]
    %s45 = sld [smem:[#allocation2 + $0x81]]
    %s46 = sld [smem:[#allocation2 + $0x82]]
    %s47 = sld [smem:[#allocation2 + $0x83]]
    %s48 = sld [smem:[#allocation2 + $0x84]]
    %s49 = sld [smem:[#allocation2 + $0x100]]
    %s50 = sld [smem:[#allocation2 + $0x101]]
    %s51 = sld [smem:[#allocation2 + $0x102]]
    %s52 = sld [smem:[#allocation2 + $0x103]]
    %s53 = sld [smem:[#allocation2 + $0x104]]
    %s54 = sld [smem:[#allocation2 + $0x180]]
    %s55 = sld [smem:[#allocation2 + $0x181]]
    %s56 = sld [smem:[#allocation2 + $0x182]]
    %s57 = sld [smem:[#allocation2 + $0x183]]
    %s58 = sld [smem:[#allocation2 + $0x184]]
    %s59 = sld [smem:[#allocation2 + $0x200]]
    %s60 = sld [smem:[#allocation2 + $0x201]]
    %s61 = sld [smem:[#allocation2 + $0x202]]
    %s62 = sld [smem:[#allocation2 + $0x203]]
    %s63 = sld [smem:[#allocation2 + $0x204]]
    %s64 = sld [smem:[#allocation4]]
    %s65 = sld [smem:[#allocation4 + $0x1]]
    %s66 = sld [smem:[#allocation4 + $0x2]]
    %s67 = sld [smem:[#allocation4 + $0x3]]
    %s68 = sld [smem:[#allocation4 + $0x4]]
    %v69 = vld [vmem:[%s2] sm:$0xff]
    %s70 = sadd.s32 0, 8
    %s71 = scalar_lea.vmem %s2, %s70
    %v72 = vld [vmem:[%s71] sm:$0xff]
    %s73 = sadd.s32 0, 16
    %s74 = scalar_lea.vmem %s2, %s73
    %v75 = vld [vmem:[%s74] sm:$0xff]
    %s76 = sadd.s32 0, 24
    %s77 = scalar_lea.vmem %s2, %s76
    %v78 = vld [vmem:[%s77] sm:$0xff]
    %s79 = sadd.s32 0, 32
    %s80 = scalar_lea.vmem %s2, %s79
    %v81 = vld [vmem:[%s80] sm:$0xff]
    %v82 = vstv %s39
    %v83 = vmul.f32 %v69, %v82
    %v84 = vstv %s40
    %v85 = vmul.f32 %v72, %v84
    %v86 = vadd.f32 %v83, %v85
    %v87 = vstv %s41
    %v88 = vmul.f32 %v75, %v87
    %v89 = vadd.f32 %v86, %v88
    %v90 = vstv %s42
    %v91 = vmul.f32 %v78, %v90
    %v92 = vadd.f32 %v89, %v91
    %v93 = vstv %s43
    %v94 = vmul.f32 %v81, %v93
    %v95 = vadd.f32 %v92, %v94
    %v96 = vstv %s64
    %v97 = vadd.f32 %v95, %v96
    %v98 = vstv %s44
    %v99 = vmul.f32 %v69, %v98
    %v100 = vstv %s45
    %v101 = vmul.f32 %v72, %v100
    %v102 = vadd.f32 %v99, %v101
    %v103 = vstv %s46
    %v104 = vmul.f32 %v75, %v103
    %v105 = vadd.f32 %v102, %v104
    %v106 = vstv %s47
    %v107 = vmul.f32 %v78, %v106
    %v108 = vadd.f32 %v105, %v107
    %v109 = vstv %s48
    %v110 = vmul.f32 %v81, %v109
    %v111 = vadd.f32 %v108, %v110
    %v112 = vstv %s65
    %v113 = vadd.f32 %v111, %v112
    %v114 = vstv %s49
    %v115 = vmul.f32 %v69, %v114
    %v116 = vstv %s50
    %v117 = vmul.f32 %v72, %v116
    %v118 = vadd.f32 %v115, %v117
    %v119 = vstv %s51
    %v120 = vmul.f32 %v75, %v119
    %v121 = vadd.f32 %v118, %v120
    %v122 = vstv %s52
    %v123 = vmul.f32 %v78, %v122
    %v124 = vadd.f32 %v121, %v123
    %v125 = vstv %s53
    %v126 = vmul.f32 %v81, %v125
    %v127 = vadd.f32 %v124, %v126
    %v128 = vstv %s66
    %v129 = vadd.f32 %v127, %v128
    %v130 = vstv %s54
    %v131 = vmul.f32 %v69, %v130
    %v132 = vstv %s55
    %v133 = vmul.f32 %v72, %v132
    %v134 = vadd.f32 %v131, %v133
    %v135 = vstv %s56
    %v136 = vmul.f32 %v75, %v135
    %v137 = vadd.f32 %v134, %v136
    %v138 = vstv %s57
    %v139 = vmul.f32 %v78, %v138
    %v140 = vadd.f32 %v137, %v139
    %v141 = vstv %s58
    %v142 = vmul.f32 %v81, %v141
    %v143 = vadd.f32 %v140, %v142
    %v144 = vstv %s67
    %v145 = vadd.f32 %v143, %v144
    %v146 = vstv %s59
    %v147 = vmul.f32 %v69, %v146
    %v148 = vstv %s60
    %v149 = vmul.f32 %v72, %v148
    %v150 = vadd.f32 %v147, %v149
    %v151 = vstv %s61
    %v152 = vmul.f32 %v75, %v151
    %v153 = vadd.f32 %v150, %v152
    %v154 = vstv %s62
    %v155 = vmul.f32 %v78, %v154
    %v156 = vadd.f32 %v153, %v155
    %v157 = vstv %s63
    %v158 = vmul.f32 %v81, %v157
    %v159 = vadd.f32 %v156, %v158
    %v160 = vstv %s68
    %v161 = vadd.f32 %v159, %v160
    %v162 = vmul.f32 %v97, %v97
    %v163 = vmul.f32 %v113, %v113
    %v164 = vmul.f32 %v129, %v129
    %v165 = vadd.f32 %v162, %v163
    %v166 = vadd.f32 %v165, %v164
    %v167 = vadd.f32 %v166, 1e-30
    %v168 = vrsqrt.pop %v167
    %v169 = vmul.f32 %v145, %v145
    %v170 = vmul.f32 %v161, %v161
    %v171 = vadd.f32 %v169, %v170
    %v172 = vadd.f32 %v171, 1e-30
    %v173 = vrsqrt.pop %v172
    %v174 = vmul.f32 %v145, %v173
    %v175 = vmul.f32 %v161, %v173
    %v176 = vsub.f32 1.0, %v174
    %v177 = vmul.f32 %v176, %v168
    %v178 = vmul.f32 %v177, %v168
    %v179 = vmul.f32 %v175, %v168
    %v180 = vmul.f32 %v97, %v113
    %v181 = vmul.f32 %v97, %v129
    %v182 = vmul.f32 %v113, %v129
    %v183 = vmul.f32 %v178, %v180
    %v184 = vmul.f32 %v178, %v181
    %v185 = vmul.f32 %v178, %v182
    %v186 = vmul.f32 %v179, %v97
    %v187 = vmul.f32 %v179, %v113
    %v188 = vmul.f32 %v179, %v129
    %v189 = vmul.f32 %v178, %v162
    %v190 = vadd.f32 %v174, %v189
    %191 = vst [vmem:[%s3] sm:$0xff] %v190
    %v192 = vsub.f32 %v183, %v188
    %s193 = scalar_lea.vmem %s3, %s70
    %194 = vst [vmem:[%s193] sm:$0xff] %v192
    %v195 = vadd.f32 %v184, %v187
    %s196 = scalar_lea.vmem %s3, %s73
    %197 = vst [vmem:[%s196] sm:$0xff] %v195
    %v198 = vadd.f32 %v183, %v188
    %s199 = scalar_lea.vmem %s3, %s76
    %200 = vst [vmem:[%s199] sm:$0xff] %v198
    %v201 = vmul.f32 %v178, %v163
    %v202 = vadd.f32 %v174, %v201
    %s203 = scalar_lea.vmem %s3, %s79
    %204 = vst [vmem:[%s203] sm:$0xff] %v202
    %v205 = vsub.f32 %v185, %v186
    %s206 = sadd.s32 0, 40
    %s207 = scalar_lea.vmem %s3, %s206
    %208 = vst [vmem:[%s207] sm:$0xff] %v205
    %v209 = vsub.f32 %v184, %v187
    %s210 = sadd.s32 0, 48
    %s211 = scalar_lea.vmem %s3, %s210
    %212 = vst [vmem:[%s211] sm:$0xff] %v209
    %v213 = vadd.f32 %v185, %v186
    %s214 = sadd.s32 0, 56
    %s215 = scalar_lea.vmem %s3, %s214
    %216 = vst [vmem:[%s215] sm:$0xff] %v213
    %v217 = vmul.f32 %v178, %v164
    %v218 = vadd.f32 %v174, %v217
    %s219 = sadd.s32 0, 64
    %s220 = scalar_lea.vmem %s3, %s219
    %221 = vst [vmem:[%s220] sm:$0xff] %v218
    // Predicated region
    $region22: #{s2s1_mean.1} parent=1 // pred_check
      _
    $region23: #{s2s1_mean.1} parent=1 // pred_check_branch
      %223 = sbr.rel (0) target = $region25
    $region24: #{s2s1_mean.1} parent=1 // pred_region
      _
    $region25: #{s2s1_mean.1} parent=1 // pred_fallthru
      _
    // Predicated region
    $region26: #{s2s1_mean.1} parent=1 // pred_check
      _
    $region27: #{s2s1_mean.1} parent=1 // pred_check_branch
      %225 = sbr.rel (0) target = $region29
    $region28: #{s2s1_mean.1} parent=1 // pred_region
      _
    $region29: #{s2s1_mean.1} parent=1 // pred_fallthru
      _
    %226 = vsyncpa [#allocation3], 1
    %227 = vsyncpa [#allocation5], 1

</llo_original>
